<compile_context>
chip_gen: v7x
topology: tpu7x:2x2x1
jax: 0.10.0
libtpu: 0.0.40
codegen_flags: <defaults>
</compile_context>

<pallas_src>
import jax
import jax.numpy as jnp
from jax.experimental import pallas as pl
from jax.experimental.pallas import tpu as pltpu


_LANE = 128          # vreg lane width
_SUBLANE = 8         # vreg sublane count (f32)
_MAX_TILE_ROWS = 2048  # 2048 * 128 * 4 B = 1 MiB per f32 input block


def _sse_partial_kernel(x_ref, t_ref, partial_ref):
    # x_ref, t_ref : (TILE_R, 128) lane/sublane-dense tiles of the flattened
    #                input and target.
    # partial_ref  : (1, 128) per-lane partial sum of squared error for this tile.
    d = x_ref[...].astype(jnp.float32) - t_ref[...].astype(jnp.float32)
    partial_ref[...] = jnp.sum(d * d, axis=0, keepdims=True)


def _round_up(a, b):
    return ((a + b - 1) // b) * b


def content_loss(x, target):
    """Pallas equivalent of ContentLoss.forward.

    Returns (output, loss) where output is the input passed through unchanged
    and loss = mean((x - target)**2).
    """
    assert x.shape == target.shape, "input/target shape mismatch"
    n = x.size

    # Flatten to a lane-dense (rows, 128) layout, rows padded to the tile size.
    rows = pl.cdiv(n, _LANE)
    tile_rows = min(_MAX_TILE_ROWS, _round_up(rows, _SUBLANE))
    rows_pad = _round_up(rows, tile_rows)
    n_pad = rows_pad * _LANE

    xf = jnp.ravel(x)
    tf = jnp.ravel(target)
    if n_pad != n:
        # Zero-pad both operands: padded positions contribute 0 to the SSE.
        xf = jnp.pad(xf, (0, n_pad - n))
        tf = jnp.pad(tf, (0, n_pad - n))
    x2 = xf.reshape(rows_pad, _LANE)
    t2 = tf.reshape(rows_pad, _LANE)

    num_tiles = rows_pad // tile_rows

    partials = pl.pallas_call(
        _sse_partial_kernel,
        out_shape=jax.ShapeDtypeStruct((num_tiles, 1, _LANE), jnp.float32),
        grid=(num_tiles,),
        in_specs=[
            pl.BlockSpec((tile_rows, _LANE), lambda i: (i, 0)),
            pl.BlockSpec((tile_rows, _LANE), lambda i: (i, 0)),
        ],
        # Leading tile dim squeezed; kernel sees a (1, 128) lane-dense block.
        out_specs=pl.BlockSpec((None, 1, _LANE), lambda i: (i, 0, 0)),
        compiler_params=pltpu.CompilerParams(
            dimension_semantics=("parallel",),
        ),
    )(x2, t2)

    # Final tiny reduction + mean via multiply (no divide on the hot path).
    loss = jnp.sum(partials) * (1.0 / n)

    # TODO(synk): the PyTorch module stores self.loss as mutable state and
    # detaches the target; here we simply return (input, loss) functionally.
    return x, loss


if __name__ == "__main__":
    key = jax.random.PRNGKey(0)
    k_in, k_tgt = jax.random.split(key)

    B, C, H, W = 2, 4, 16, 16
    x = jax.random.normal(k_in, (B, C, H, W), dtype=jnp.float32)
    target = jax.random.normal(k_tgt, (B, C, H, W), dtype=jnp.float32)

    out, loss = content_loss(x, target)
    out = jax.block_until_ready(out)
    loss = jax.block_until_ready(loss)

    # pure-JAX reference
    ref_loss = jnp.mean((x - target) ** 2)

    assert out.shape == x.shape
    assert out.dtype == x.dtype
    assert bool(jnp.all(out == x)), "forward must pass the input through unchanged"
    assert jnp.allclose(loss, ref_loss, atol=1e-6, rtol=1e-6), "MSE mismatch vs reference"

    print("KERNEL_OK")
</pallas_src>

<mosaic_0001>
module attributes {stable_mosaic.version = 11 : i64} {
  func.func @_sse_partial_kernel(%arg0: i32, %arg1: memref<16x128xf32, #tpu.memory_space<vmem>>, %arg2: memref<16x128xf32, #tpu.memory_space<vmem>>, %arg3: memref<1x1x128xf32, #tpu.memory_space<vmem>>) attributes {dimension_semantics = [#tpu.dimension_semantics<parallel>], iteration_bounds = array<i64: 1>, scalar_prefetch = 0 : i64, scratch_operands = 0 : i64, tpu.core_type = #tpu.core_type<tc>, window_params = [{transform_indices = @transform_0, window_bounds = array<i64: 16, 128>}, {transform_indices = @transform_1, window_bounds = array<i64: 16, 128>}, {transform_indices = @transform_2, window_bounds = array<i64: 1, 1, 128>}]} {
    %c0 = arith.constant 0 : index
    %c0_0 = arith.constant 0 : index
    %0 = vector.load %arg1[%c0, %c0_0] : memref<16x128xf32, #tpu.memory_space<vmem>>, vector<16x128xf32>
    %c0_1 = arith.constant 0 : index
    %c0_2 = arith.constant 0 : index
    %1 = vector.load %arg2[%c0_1, %c0_2] : memref<16x128xf32, #tpu.memory_space<vmem>>, vector<16x128xf32>
    %2 = arith.subf %0, %1 : vector<16x128xf32>
    %3 = arith.mulf %2, %2 : vector<16x128xf32>
    %cst = arith.constant dense<0.000000e+00> : vector<128xf32>
    %4 = vector.multi_reduction <add>, %3, %cst [0] : vector<16x128xf32> to vector<128xf32>
    %5 = vector.shape_cast %4 : vector<128xf32> to vector<1x128xf32>
    %c0_3 = arith.constant 0 : index
    %c0_4 = arith.constant 0 : index
    %c0_5 = arith.constant 0 : index
    %6 = vector.load %arg3[%c0_3, %c0_4, %c0_5] : memref<1x1x128xf32, #tpu.memory_space<vmem>>, vector<1x1x128xf32>
    %7 = vector.shape_cast %6 : vector<1x1x128xf32> to vector<1x128xf32>
    %8 = vector.shape_cast %5 : vector<1x128xf32> to vector<1x1x128xf32>
    tpu.vector_store %arg3[%c0_3, %c0_4, %c0_5], %8 {strides = array<i32>} : memref<1x1x128xf32, #tpu.memory_space<vmem>>, vector<1x1x128xf32>,
    return
  }
  func.func @transform_0(%arg0: i32) -> (i32, i32) {
    %c0_i32 = arith.constant 0 : i32
    %c0_i32_0 = arith.constant 0 : i32
    return %arg0, %c0_i32 : i32, i32
  }
  func.func @transform_1(%arg0: i32) -> (i32, i32) {
    %c0_i32 = arith.constant 0 : i32
    %c0_i32_0 = arith.constant 0 : i32
    return %arg0, %c0_i32 : i32, i32
  }
  func.func @transform_2(%arg0: i32) -> (i32, i32, i32) {
    %c0_i32 = arith.constant 0 : i32
    %c0_i32_0 = arith.constant 0 : i32
    %c0_i32_1 = arith.constant 0 : i32
    return %arg0, %c0_i32, %c0_i32_0 : i32, i32, i32
  }
}

</mosaic_0001>

<llo_original>
// kernel: tpu_custom_call.1
$region0: #{tpu_custom_call.1}
  #allocation0 [shape = 'u32[]', space=smem, size = 0x4, offset = 0x4, fixed_abs, tag = 'smem constant byte address 0x4 - core index']
  #allocation1 [shape = 'u32[144,128]{1,0:T(1,128)}', space=vmem, size = 0x12000, scoped, tag = 'internal scratch']
  %s0 = inlined_call_operand.hbm [shape: f32[16,128], index: 0, kind: input, shape index: {}]
  %s1 = inlined_call_operand.hbm [shape: f32[16,128], index: 1, kind: input, shape index: {}]
  %s2 = inlined_call_operand.hbm [shape: f32[1,1,128], index: 2, kind: output, shape index: {}]
  %s3 = sld [smem:[#allocation0]]
  $region26: #{tpu_custom_call.1} parent=0
    _
  %s5 = ssub.s32 1, %s3
  %s6 = scalar_select 0, %s5, %s3
  $region1: #{tpu_custom_call.1} parent=0
    #allocation2 [shape = 'u8[8192]{0}', space=vmem, size = 0x2000, scoped, tag = 'input window, operand 0, single buffered']
    #allocation3 [shape = 's32[1]{0}', space=sflag, size = 0x4, scoped, tag = 'scoped memory for tpu_custom_call.1']
    #allocation4 [shape = 's32[1]{0}', space=sflag, size = 0x4, scoped, tag = 'scoped memory for tpu_custom_call.1']
    #allocation5 [shape = 'u8[8192]{0}', space=vmem, size = 0x2000, scoped, tag = 'input window, operand 1, single buffered']
    #allocation6 [shape = 's32[1]{0}', space=sflag, size = 0x4, scoped, tag = 'scoped memory for tpu_custom_call.1']
    #allocation7 [shape = 'u8[512]{0}', space=vmem, size = 0x400, scoped, tag = 'output window, operand 0, single buffered']
    %7 = vsyncpa [#allocation3], 0
    %8 = vsyncpa [#allocation6], 0
    %9 = vsyncpa [#allocation4], 0
    // Predicated region
    $region2: #{tpu_custom_call.1} parent=1 // pred_check
      _
    $region3: #{tpu_custom_call.1} parent=1 // pred_check_branch
      %11 = sbr.rel (0) target = $region5
    $region4: #{tpu_custom_call.1} parent=1 // pred_region
      %s13 = ssub.s32 256, 256
      %14 = vsyncadd [#allocation3], %s13
      %s15 = sshll.u32 [#allocation2], 4
      %s16 = int_to_ptr.vmem [resolvable:$true] %s15
      %21 = dma.hbm_to_vmem [thread:$0]  %s0, 256, %s16, [#allocation3], 128, 128, 8
    $region5: #{tpu_custom_call.1} parent=1 // pred_fallthru
      _
    // Predicated region
    $region6: #{tpu_custom_call.1} parent=1 // pred_check
      _
    $region7: #{tpu_custom_call.1} parent=1 // pred_check_branch
      %23 = sbr.rel (0) target = $region9
    $region8: #{tpu_custom_call.1} parent=1 // pred_region
      %s25 = ssub.s32 256, 256
      %26 = vsyncadd [#allocation6], %s25
      %s27 = sshll.u32 [#allocation5], 4
      %s28 = int_to_ptr.vmem [resolvable:$true] %s27
      %33 = dma.hbm_to_vmem [thread:$0]  %s1, 256, %s28, [#allocation6], 128, 128, 8
    $region9: #{tpu_custom_call.1} parent=1 // pred_fallthru
      _
    // Predicated region
    $region10: #{tpu_custom_call.1} parent=1 // pred_check
      _
    $region11: #{tpu_custom_call.1} parent=1 // pred_check_branch
      %35 = sbr.rel (0) target = $region13
    $region12: #{tpu_custom_call.1} parent=1 // pred_region
      %36 = dma.done [#allocation3], 256
    $region13: #{tpu_custom_call.1} parent=1 // pred_fallthru
      _
    // Predicated region
    $region14: #{tpu_custom_call.1} parent=1 // pred_check
      _
    $region15: #{tpu_custom_call.1} parent=1 // pred_check_branch
      %38 = sbr.rel (0) target = $region17
    $region16: #{tpu_custom_call.1} parent=1 // pred_region
      %39 = dma.done [#allocation6], 256
    $region17: #{tpu_custom_call.1} parent=1 // pred_fallthru
      _
    %v40 = vld [vmem:[#allocation2] sm:$0xff]
    %v41 = vld [vmem:[#allocation2 + $0x8] sm:$0xff]
    %v42 = vld [vmem:[#allocation5] sm:$0xff]
    %v43 = vld [vmem:[#allocation5 + $0x8] sm:$0xff]
    %v44 = vsub.f32 %v40, %v42
    %v45 = vsub.f32 %v41, %v43
    %v46 = vmul.f32 %v44, %v44
    %v47 = vmul.f32 %v45, %v45
    %v48 = vadd.f32 %v46, %v47
    %v49 = vrot.slane %v48, 4
    %v50 = vadd.f32 %v48, %v49
    %v51 = vrot.slane %v50, 2
    %v52 = vadd.f32 %v50, %v51
    %v53 = vrot.slane %v52, 1
    %v54 = vadd.f32 %v52, %v53
    %55 = vst [vmem:[#allocation7] sm:$0x1] %v54
    // Predicated region
    $region18: #{tpu_custom_call.1} parent=1 // pred_check
      _
    $region19: #{tpu_custom_call.1} parent=1 // pred_check_branch
      %57 = sbr.rel (0) target = $region21
    $region20: #{tpu_custom_call.1} parent=1 // pred_region
      %s59 = ssub.s32 16, 16
      %60 = vsyncadd [#allocation4], %s59
      %s62 = sshll.u32 [#allocation7], 4
      %s63 = int_to_ptr.vmem [resolvable:$true] %s62
      %65 = dma.vmem_to_hbm [thread:$0]  %s63, 16, %s2, [#allocation4]
    $region21: #{tpu_custom_call.1} parent=1 // pred_fallthru
      _
    // Predicated region
    $region22: #{tpu_custom_call.1} parent=1 // pred_check
      _
    $region23: #{tpu_custom_call.1} parent=1 // pred_check_branch
      %67 = sbr.rel (0) target = $region25
    $region24: #{tpu_custom_call.1} parent=1 // pred_region
      %68 = dma.done [#allocation4], 16
    $region25: #{tpu_custom_call.1} parent=1 // pred_fallthru
      _
    %69 = vsyncpa [#allocation3], 1
    %70 = vsyncpa [#allocation6], 1
    %71 = vsyncpa [#allocation4], 1

</llo_original>
